<compile_context>
chip_gen: v7x
topology: tpu7x:2x2x1
jax: 0.10.0
libtpu: 0.0.40
codegen_flags: <defaults>
</compile_context>

<pallas_src>
import math
import numpy as np

import jax
import jax.numpy as jnp
from jax import lax
from jax.experimental import pallas as pl
from jax.experimental.pallas import tpu as pltpu

# ----------------------- small, module-consistent sizes ----------------------
BS = 2
NUM_CLASSES = 5
LATENT = 32            # latent_dim (even, as required by PositionalEncoding)
NFRAMES = 8            # num_frames == mask.shape[1] == conv in/out channels
NJOINTS = 16
NFEATS = 4
JF = NJOINTS * NFEATS  # flattened spatial size per batch element (64)
LANES = BS * JF        # batch packed into lanes -> 128 (full vreg width)
TCN_LAYERS = 4
BN_EPS = 1e-5
INV_SQRT2 = 0.7071067811865476


# ------------------------------ in-kernel math -------------------------------
def _gelu_exact(x):
    # erf-form GELU (nn.GELU() default) via Abramowitz & Stegun 7.1.26.
    # The division goes through pl.reciprocal(approx=True) -> EUP slot.
    a1, a2, a3, a4, a5 = 0.254829592, -0.284496736, 1.421413741, -1.453152027, 1.061405429
    p = 0.3275911
    u = x * INV_SQRT2
    sgn = jnp.where(u >= 0.0, 1.0, -1.0)
    au = jnp.abs(u)
    t = pl.reciprocal(1.0 + p * au, approx=True)
    poly = ((((a5 * t + a4) * t + a3) * t + a2) * t + a1) * t
    erf = sgn * (1.0 - poly * jnp.exp(-au * au))
    return 0.5 * x * (1.0 + erf)


def decoder_kernel(e_ref, wbig_ref, bnscale_ref, bnshift_ref,
                   tapmask_ref, framemask_ref, out_ref):
    # e_ref: (1, LANES) feature embedding (identical for every frame, since the
    # module's PositionalEncoding is indexed by batch position, not frame).
    x = jnp.broadcast_to(e_ref[...], (NFRAMES, LANES))            # (8, 128)
    tapmask = tapmask_ref[...]                                    # (72, 128)

    for i in range(TCN_LAYERS):
        # 3x3 conv: 9 lane-rolled copies (XLU) + boundary masks (VPU),
        # then ONE channel-mix matmul (MXU) per layer.
        parts = []
        for k in range(9):
            s = (k // 3 - 1) * NFEATS + (k % 3 - 1)               # lane shift in [-5, 5]
            parts.append(x if s == 0 else pltpu.roll(x, (-s) % LANES, axis=1))
        stack = jnp.concatenate(parts, axis=0) * tapmask          # (72, 128)
        y = jnp.dot(wbig_ref[i], stack,
                    preferred_element_type=jnp.float32)           # (8, 128)
        y = y * bnscale_ref[i] + bnshift_ref[i]                   # conv bias + BN (folded, eval)
        x = _gelu_exact(y) + x                                    # GELU + residual

    out_ref[...] = x * framemask_ref[...]                         # z[~mask] = 0


# --------------------------------- host glue ---------------------------------
def positional_encoding(n, d):
    pos = jnp.arange(n, dtype=jnp.float32)[:, None]
    div = jnp.exp(jnp.arange(0, d, 2, dtype=jnp.float32) * (-math.log(10000.0) / d))
    pe = jnp.zeros((n, d), jnp.float32)
    pe = pe.at[:, 0::2].set(jnp.sin(pos * div))
    pe = pe.at[:, 1::2].set(jnp.cos(pos * div))
    return pe                                                     # (n, d)


def build_tap_mask():
    # mask[k*NFRAMES + ci, b*JF + h*NFEATS + w] = 1 iff tap k's source position
    # (h + dh, w + dw) is inside the (NJOINTS, NFEATS) grid (also kills any
    # cross-batch / wrap-around lanes introduced by the circular roll).
    m = np.zeros((9, JF), np.float32)
    for k in range(9):
        dh, dw = k // 3 - 1, k % 3 - 1
        for h in range(NJOINTS):
            for w in range(NFEATS):
                if 0 <= h + dh < NJOINTS and 0 <= w + dw < NFEATS:
                    m[k, h * NFEATS + w] = 1.0
    m = np.tile(m, (1, BS))                                       # (9, LANES)
    return np.repeat(m, NFRAMES, axis=0)                          # (72, LANES)


def init_params(key):
    ks = jax.random.split(key, 9)
    actionBiases = jax.random.normal(ks[0], (NUM_CLASSES, LATENT), jnp.float32)

    lim = 1.0 / math.sqrt(LATENT)
    wfe = jax.random.uniform(ks[1], (JF, LATENT), jnp.float32, -lim, lim)
    bfe = jax.random.uniform(ks[2], (JF,), jnp.float32, -lim, lim)

    clim = 1.0 / math.sqrt(NFRAMES * 9)
    wconv_oihw = jax.random.uniform(ks[3], (TCN_LAYERS, NFRAMES, NFRAMES, 3, 3),
                                    jnp.float32, -clim, clim)
    cbias = jax.random.uniform(ks[4], (TCN_LAYERS, NFRAMES), jnp.float32, -clim, clim)

    # BatchNorm2d (eval mode) parameters / running stats
    gamma = 1.0 + 0.1 * jax.random.normal(ks[5], (TCN_LAYERS, NFRAMES), jnp.float32)
    beta = 0.1 * jax.random.normal(ks[6], (TCN_LAYERS, NFRAMES), jnp.float32)
    rmean = 0.1 * jax.random.normal(ks[7], (TCN_LAYERS, NFRAMES), jnp.float32)
    rvar = 0.5 + jnp.abs(jax.random.normal(ks[8], (TCN_LAYERS, NFRAMES), jnp.float32))
    bnscale = gamma / jnp.sqrt(rvar + BN_EPS)
    bnshift = beta - rmean * bnscale

    # --- kernel-side packing ---
    # Wbig[i, co, k*CI + ci] = wconv_oihw[i, co, ci, kh, kw],  k = kh*3 + kw
    wbig = jnp.transpose(wconv_oihw, (0, 1, 3, 4, 2)).reshape(TCN_LAYERS, NFRAMES, 9 * NFRAMES)
    bnshift_fold = bnshift + cbias * bnscale          # fold conv bias into BN shift
    bnscale_b = jnp.broadcast_to(bnscale[:, :, None], (TCN_LAYERS, NFRAMES, LANES))
    bnshift_b = jnp.broadcast_to(bnshift_fold[:, :, None], (TCN_LAYERS, NFRAMES, LANES))

    return dict(
        actionBiases=actionBiases, wfe=wfe, bfe=bfe,
        # reference-side (unfolded) parameters
        wconv_oihw=wconv_oihw, cbias_vec=cbias,
        bnscale_vec=bnscale, bnshift_vec=bnshift,
        # kernel-side packed parameters
        wbig=wbig, bnscale_b=bnscale_b, bnshift_b=bnshift_b,
        tapmask=jnp.asarray(build_tap_mask()),
    )


def decoder_forward(z, y, mask, params):
    bs, T = mask.shape
    assert bs == BS and T == NFRAMES

    # Module semantics: PositionalEncoding is applied to a (bs, nframes, d)
    # tensor whose dim-0 is batch, so pe is indexed by batch position (this
    # matches the original PyTorch forward exactly).
    pe = positional_encoding(bs, LATENT)
    v = z + params['actionBiases'][y] + pe                        # (bs, LATENT)
    # feature_embedding Linear hoisted to XLA (single tiny matmul).
    e = v @ params['wfe'].T + params['bfe']                       # (bs, JF)
    e_packed = e.reshape(1, LANES)                                # batch -> lanes

    # framemask[t, b*JF + p] = mask[b, t]   (implements z[~mask] = 0)
    framemask = jnp.broadcast_to(
        mask.astype(jnp.float32).T[:, :, None], (T, bs, JF)).reshape(T, LANES)

    # No grid: a single lane-dense (8, 128) slab; all (tiny) params whole in VMEM.
    # TODO(synk): if batch grows beyond 2, add a leading "parallel" grid axis that
    # processes 128-lane batch groups per step (megacore sharding on v7x).
    out = pl.pallas_call(
        decoder_kernel,
        out_shape=jax.ShapeDtypeStruct((NFRAMES, LANES), jnp.float32),
        in_specs=[pl.BlockSpec(memory_space=pltpu.MemorySpace.VMEM)] * 6,
        out_specs=pl.BlockSpec(memory_space=pltpu.MemorySpace.VMEM),
    )(e_packed, params['wbig'], params['bnscale_b'], params['bnshift_b'],
      params['tapmask'], framemask)

    # glue: unpack lanes -> (bs, nframes, njoints, nfeats), then permute(0,2,3,1)
    out = out.reshape(T, bs, NJOINTS, NFEATS)
    return jnp.transpose(out, (1, 2, 3, 0))                       # (bs, njoints, nfeats, nframes)


# --------------------------- pure-JAX reference ------------------------------
def reference_forward(z, y, mask, params):
    bs, T = mask.shape
    pe = positional_encoding(bs, LATENT)
    v = z + params['actionBiases'][y]
    zrep = jnp.repeat(v[:, None, :], T, axis=1)
    timequeries = jnp.zeros((bs, T, LATENT), jnp.float32) + pe[:, None, :]
    e = (zrep + timequeries) @ params['wfe'].T + params['bfe']
    x = e.reshape(bs, T, NJOINTS, NFEATS)
    for i in range(TCN_LAYERS):
        c = lax.conv_general_dilated(x, params['wconv_oihw'][i], (1, 1), 'SAME',
                                     dimension_numbers=('NCHW', 'OIHW', 'NCHW'))
        c = c + params['cbias_vec'][i][None, :, None, None]
        c = (c * params['bnscale_vec'][i][None, :, None, None]
             + params['bnshift_vec'][i][None, :, None, None])
        x = jax.nn.gelu(c, approximate=False) + x
    x = x * mask.astype(x.dtype)[:, :, None, None]
    return jnp.transpose(x, (0, 2, 3, 1))


# ----------------------------------- main ------------------------------------
if __name__ == "__main__":
    key = jax.random.PRNGKey(0)
    kp, kz = jax.random.split(key)
    params = init_params(kp)

    z = jax.random.normal(kz, (BS, LATENT), jnp.float32)
    y = jnp.array([1, 3], dtype=jnp.int32)
    lengths = jnp.array([NFRAMES, 5], dtype=jnp.int32)
    mask = jnp.arange(NFRAMES, dtype=jnp.int32)[None, :] < lengths[:, None]   # (bs, nframes) bool

    out = jax.block_until_ready(decoder_forward(z, y, mask, params))
    ref = jax.block_until_ready(reference_forward(z, y, mask, params))

    assert out.shape == (BS, NJOINTS, NFEATS, NFRAMES)
    err = float(jnp.max(jnp.abs(out - ref)))
    if not (err < 2e-2):
        raise AssertionError(f"Pallas output mismatch vs reference, max abs err = {err}")
    print("KERNEL_OK")
</pallas_src>

<mosaic_0001>
module attributes {stable_mosaic.version = 11 : i64} {
  func.func @decoder_kernel(%arg0: memref<1x128xf32, #tpu.memory_space<vmem>>, %arg1: memref<4x8x72xf32, #tpu.memory_space<vmem>>, %arg2: memref<4x8x128xf32, #tpu.memory_space<vmem>>, %arg3: memref<4x8x128xf32, #tpu.memory_space<vmem>>, %arg4: memref<72x128xf32, #tpu.memory_space<vmem>>, %arg5: memref<8x128xf32, #tpu.memory_space<vmem>>, %arg6: memref<8x128xf32, #tpu.memory_space<vmem>>) attributes {dimension_semantics = [], scalar_prefetch = 0 : i64, scratch_operands = 0 : i64, tpu.core_type = #tpu.core_type<tc>} {
    %c0 = arith.constant 0 : index
    %c0_0 = arith.constant 0 : index
    %0 = vector.load %arg0[%c0, %c0_0] : memref<1x128xf32, #tpu.memory_space<vmem>>, vector<1x128xf32>
    %1 = vector.shape_cast %0 : vector<1x128xf32> to vector<1x128xf32>
    %2 = vector.broadcast %1 : vector<1x128xf32> to vector<8x128xf32>
    %c0_1 = arith.constant 0 : index
    %c0_2 = arith.constant 0 : index
    %3 = vector.load %arg4[%c0_1, %c0_2] : memref<72x128xf32, #tpu.memory_space<vmem>>, vector<72x128xf32>
    %c5_i32 = arith.constant 5 : i32
    %4 = tpu.dynamic_rotate %2 by %c5_i32 dim 1 : vector<8x128xf32>, i32 -> vector<8x128xf32>
    %c4_i32 = arith.constant 4 : i32
    %5 = tpu.dynamic_rotate %2 by %c4_i32 dim 1 : vector<8x128xf32>, i32 -> vector<8x128xf32>
    %c3_i32 = arith.constant 3 : i32
    %6 = tpu.dynamic_rotate %2 by %c3_i32 dim 1 : vector<8x128xf32>, i32 -> vector<8x128xf32>
    %c1_i32 = arith.constant 1 : i32
    %7 = tpu.dynamic_rotate %2 by %c1_i32 dim 1 : vector<8x128xf32>, i32 -> vector<8x128xf32>
    %c127_i32 = arith.constant 127 : i32
    %8 = tpu.dynamic_rotate %2 by %c127_i32 dim 1 : vector<8x128xf32>, i32 -> vector<8x128xf32>
    %c125_i32 = arith.constant 125 : i32
    %9 = tpu.dynamic_rotate %2 by %c125_i32 dim 1 : vector<8x128xf32>, i32 -> vector<8x128xf32>
    %c124_i32 = arith.constant 124 : i32
    %10 = tpu.dynamic_rotate %2 by %c124_i32 dim 1 : vector<8x128xf32>, i32 -> vector<8x128xf32>
    %c123_i32 = arith.constant 123 : i32
    %11 = tpu.dynamic_rotate %2 by %c123_i32 dim 1 : vector<8x128xf32>, i32 -> vector<8x128xf32>
    %12 = tpu.concatenate %4, %5, %6, %7, %2, %8, %9, %10, %11 in 0 : vector<8x128xf32>, vector<8x128xf32>, vector<8x128xf32>, vector<8x128xf32>, vector<8x128xf32>, vector<8x128xf32>, vector<8x128xf32>, vector<8x128xf32>, vector<8x128xf32> -> vector<72x128xf32>
    %13 = arith.mulf %12, %3 : vector<72x128xf32>
    %c0_3 = arith.constant 0 : index
    %c0_4 = arith.constant 0 : index
    %c0_5 = arith.constant 0 : index
    %14 = vector.load %arg1[%c0_3, %c0_4, %c0_5] : memref<4x8x72xf32, #tpu.memory_space<vmem>>, vector<1x8x72xf32>
    %15 = vector.shape_cast %14 : vector<1x8x72xf32> to vector<8x72xf32>
    %cst = arith.constant dense<0.000000e+00> : vector<8x128xf32>
    %16 = tpu.matmul %15, %13, %cst {dimension_numbers = #tpu.dot_dimension_numbers<[1], [0], [0], [1], [0, 0, 1, 1], [], []>} : vector<8x72xf32>, vector<72x128xf32>, vector<8x128xf32> -> vector<8x128xf32>
    %c0_6 = arith.constant 0 : index
    %c0_7 = arith.constant 0 : index
    %c0_8 = arith.constant 0 : index
    %17 = vector.load %arg2[%c0_6, %c0_7, %c0_8] : memref<4x8x128xf32, #tpu.memory_space<vmem>>, vector<1x8x128xf32>
    %18 = vector.shape_cast %17 : vector<1x8x128xf32> to vector<8x128xf32>
    %19 = arith.mulf %16, %18 : vector<8x128xf32>
    %c0_9 = arith.constant 0 : index
    %c0_10 = arith.constant 0 : index
    %c0_11 = arith.constant 0 : index
    %20 = vector.load %arg3[%c0_9, %c0_10, %c0_11] : memref<4x8x128xf32, #tpu.memory_space<vmem>>, vector<1x8x128xf32>
    %21 = vector.shape_cast %20 : vector<1x8x128xf32> to vector<8x128xf32>
    %22 = arith.addf %19, %21 : vector<8x128xf32>
    %cst_12 = arith.constant 0.707106769 : f32
    %23 = vector.broadcast %cst_12 : f32 to vector<8x128xf32>
    %24 = arith.mulf %22, %23 : vector<8x128xf32>
    %cst_13 = arith.constant 0.000000e+00 : f32
    %25 = vector.broadcast %cst_13 : f32 to vector<8x128xf32>
    %26 = arith.cmpf oge, %24, %25 : vector<8x128xf32>
    %cst_14 = arith.constant 1.000000e+00 : f32
    %cst_15 = arith.constant -1.000000e+00 : f32
    %27 = vector.broadcast %cst_14 : f32 to vector<8x128xf32>
    %28 = vector.broadcast %cst_15 : f32 to vector<8x128xf32>
    %29 = arith.select %26, %27, %28 : vector<8x128xi1>, vector<8x128xf32>
    %30 = math.absf %24 : vector<8x128xf32>
    %cst_16 = arith.constant 0.327591091 : f32
    %31 = vector.broadcast %cst_16 : f32 to vector<8x128xf32>
    %32 = arith.mulf %31, %30 : vector<8x128xf32>
    %cst_17 = arith.constant 1.000000e+00 : f32
    %33 = vector.broadcast %cst_17 : f32 to vector<8x128xf32>
    %34 = arith.addf %33, %32 : vector<8x128xf32>
    %35 = tpu.reciprocal %34 {approx = true} : vector<8x128xf32> -> vector<8x128xf32>
    %cst_18 = arith.constant 1.06140542 : f32
    %36 = vector.broadcast %cst_18 : f32 to vector<8x128xf32>
    %37 = arith.mulf %36, %35 : vector<8x128xf32>
    %cst_19 = arith.constant -1.45315206 : f32
    %38 = vector.broadcast %cst_19 : f32 to vector<8x128xf32>
    %39 = arith.addf %37, %38 : vector<8x128xf32>
    %40 = arith.mulf %39, %35 : vector<8x128xf32>
    %cst_20 = arith.constant 1.42141378 : f32
    %41 = vector.broadcast %cst_20 : f32 to vector<8x128xf32>
    %42 = arith.addf %40, %41 : vector<8x128xf32>
    %43 = arith.mulf %42, %35 : vector<8x128xf32>
    %cst_21 = arith.constant -0.284496725 : f32
    %44 = vector.broadcast %cst_21 : f32 to vector<8x128xf32>
    %45 = arith.addf %43, %44 : vector<8x128xf32>
    %46 = arith.mulf %45, %35 : vector<8x128xf32>
    %cst_22 = arith.constant 0.254829586 : f32
    %47 = vector.broadcast %cst_22 : f32 to vector<8x128xf32>
    %48 = arith.addf %46, %47 : vector<8x128xf32>
    %49 = arith.mulf %48, %35 : vector<8x128xf32>
    %cst_23 = arith.constant 0.000000e+00 : f32
    %50 = vector.broadcast %cst_23 : f32 to vector<8x128xf32>
    %51 = arith.subf %50, %30 : vector<8x128xf32>
    %52 = arith.mulf %51, %30 : vector<8x128xf32>
    %53 = math.exp %52 : vector<8x128xf32>
    %54 = arith.mulf %49, %53 : vector<8x128xf32>
    %cst_24 = arith.constant 1.000000e+00 : f32
    %55 = vector.broadcast %cst_24 : f32 to vector<8x128xf32>
    %56 = arith.subf %55, %54 : vector<8x128xf32>
    %57 = arith.mulf %29, %56 : vector<8x128xf32>
    %cst_25 = arith.constant 5.000000e-01 : f32
    %58 = vector.broadcast %cst_25 : f32 to vector<8x128xf32>
    %59 = arith.mulf %58, %22 : vector<8x128xf32>
    %cst_26 = arith.constant 1.000000e+00 : f32
    %60 = vector.broadcast %cst_26 : f32 to vector<8x128xf32>
    %61 = arith.addf %60, %57 : vector<8x128xf32>
    %62 = arith.mulf %59, %61 : vector<8x128xf32>
    %63 = arith.addf %62, %2 : vector<8x128xf32>
    %c5_i32_27 = arith.constant 5 : i32
    %64 = tpu.dynamic_rotate %63 by %c5_i32_27 dim 1 : vector<8x128xf32>, i32 -> vector<8x128xf32>
    %c4_i32_28 = arith.constant 4 : i32
    %65 = tpu.dynamic_rotate %63 by %c4_i32_28 dim 1 : vector<8x128xf32>, i32 -> vector<8x128xf32>
    %c3_i32_29 = arith.constant 3 : i32
    %66 = tpu.dynamic_rotate %63 by %c3_i32_29 dim 1 : vector<8x128xf32>, i32 -> vector<8x128xf32>
    %c1_i32_30 = arith.constant 1 : i32
    %67 = tpu.dynamic_rotate %63 by %c1_i32_30 dim 1 : vector<8x128xf32>, i32 -> vector<8x128xf32>
    %c127_i32_31 = arith.constant 127 : i32
    %68 = tpu.dynamic_rotate %63 by %c127_i32_31 dim 1 : vector<8x128xf32>, i32 -> vector<8x128xf32>
    %c125_i32_32 = arith.constant 125 : i32
    %69 = tpu.dynamic_rotate %63 by %c125_i32_32 dim 1 : vector<8x128xf32>, i32 -> vector<8x128xf32>
    %c124_i32_33 = arith.constant 124 : i32
    %70 = tpu.dynamic_rotate %63 by %c124_i32_33 dim 1 : vector<8x128xf32>, i32 -> vector<8x128xf32>
    %c123_i32_34 = arith.constant 123 : i32
    %71 = tpu.dynamic_rotate %63 by %c123_i32_34 dim 1 : vector<8x128xf32>, i32 -> vector<8x128xf32>
    %72 = tpu.concatenate %64, %65, %66, %67, %63, %68, %69, %70, %71 in 0 : vector<8x128xf32>, vector<8x128xf32>, vector<8x128xf32>, vector<8x128xf32>, vector<8x128xf32>, vector<8x128xf32>, vector<8x128xf32>, vector<8x128xf32>, vector<8x128xf32> -> vector<72x128xf32>
    %73 = arith.mulf %72, %3 : vector<72x128xf32>
    %c1 = arith.constant 1 : index
    %c0_35 = arith.constant 0 : index
    %c0_36 = arith.constant 0 : index
    %74 = vector.load %arg1[%c1, %c0_35, %c0_36] : memref<4x8x72xf32, #tpu.memory_space<vmem>>, vector<1x8x72xf32>
    %75 = vector.shape_cast %74 : vector<1x8x72xf32> to vector<8x72xf32>
    %cst_37 = arith.constant dense<0.000000e+00> : vector<8x128xf32>
    %76 = tpu.matmul %75, %73, %cst_37 {dimension_numbers = #tpu.dot_dimension_numbers<[1], [0], [0], [1], [0, 0, 1, 1], [], []>} : vector<8x72xf32>, vector<72x128xf32>, vector<8x128xf32> -> vector<8x128xf32>
    %c1_38 = arith.constant 1 : index
    %c0_39 = arith.constant 0 : index
    %c0_40 = arith.constant 0 : index
    %77 = vector.load %arg2[%c1_38, %c0_39, %c0_40] : memref<4x8x128xf32, #tpu.memory_space<vmem>>, vector<1x8x128xf32>
    %78 = vector.shape_cast %77 : vector<1x8x128xf32> to vector<8x128xf32>
    %79 = arith.mulf %76, %78 : vector<8x128xf32>
    %c1_41 = arith.constant 1 : index
    %c0_42 = arith.constant 0 : index
    %c0_43 = arith.constant 0 : index
    %80 = vector.load %arg3[%c1_41, %c0_42, %c0_43] : memref<4x8x128xf32, #tpu.memory_space<vmem>>, vector<1x8x128xf32>
    %81 = vector.shape_cast %80 : vector<1x8x128xf32> to vector<8x128xf32>
    %82 = arith.addf %79, %81 : vector<8x128xf32>
    %cst_44 = arith.constant 0.707106769 : f32
    %83 = vector.broadcast %cst_44 : f32 to vector<8x128xf32>
    %84 = arith.mulf %82, %83 : vector<8x128xf32>
    %cst_45 = arith.constant 0.000000e+00 : f32
    %85 = vector.broadcast %cst_45 : f32 to vector<8x128xf32>
    %86 = arith.cmpf oge, %84, %85 : vector<8x128xf32>
    %cst_46 = arith.constant 1.000000e+00 : f32
    %cst_47 = arith.constant -1.000000e+00 : f32
    %87 = vector.broadcast %cst_46 : f32 to vector<8x128xf32>
    %88 = vector.broadcast %cst_47 : f32 to vector<8x128xf32>
    %89 = arith.select %86, %87, %88 : vector<8x128xi1>, vector<8x128xf32>
    %90 = math.absf %84 : vector<8x128xf32>
    %cst_48 = arith.constant 0.327591091 : f32
    %91 = vector.broadcast %cst_48 : f32 to vector<8x128xf32>
    %92 = arith.mulf %91, %90 : vector<8x128xf32>
    %cst_49 = arith.constant 1.000000e+00 : f32
    %93 = vector.broadcast %cst_49 : f32 to vector<8x128xf32>
    %94 = arith.addf %93, %92 : vector<8x128xf32>
    %95 = tpu.reciprocal %94 {approx = true} : vector<8x128xf32> -> vector<8x128xf32>
    %cst_50 = arith.constant 1.06140542 : f32
    %96 = vector.broadcast %cst_50 : f32 to vector<8x128xf32>
    %97 = arith.mulf %96, %95 : vector<8x128xf32>
    %cst_51 = arith.constant -1.45315206 : f32
    %98 = vector.broadcast %cst_51 : f32 to vector<8x128xf32>
    %99 = arith.addf %97, %98 : vector<8x128xf32>
    %100 = arith.mulf %99, %95 : vector<8x128xf32>
    %cst_52 = arith.constant 1.42141378 : f32
    %101 = vector.broadcast %cst_52 : f32 to vector<8x128xf32>
    %102 = arith.addf %100, %101 : vector<8x128xf32>
    %103 = arith.mulf %102, %95 : vector<8x128xf32>
    %cst_53 = arith.constant -0.284496725 : f32
    %104 = vector.broadcast %cst_53 : f32 to vector<8x128xf32>
    %105 = arith.addf %103, %104 : vector<8x128xf32>
    %106 = arith.mulf %105, %95 : vector<8x128xf32>
    %cst_54 = arith.constant 0.254829586 : f32
    %107 = vector.broadcast %cst_54 : f32 to vector<8x128xf32>
    %108 = arith.addf %106, %107 : vector<8x128xf32>
    %109 = arith.mulf %108, %95 : vector<8x128xf32>
    %cst_55 = arith.constant 0.000000e+00 : f32
    %110 = vector.broadcast %cst_55 : f32 to vector<8x128xf32>
    %111 = arith.subf %110, %90 : vector<8x128xf32>
    %112 = arith.mulf %111, %90 : vector<8x128xf32>
    %113 = math.exp %112 : vector<8x128xf32>
    %114 = arith.mulf %109, %113 : vector<8x128xf32>
    %cst_56 = arith.constant 1.000000e+00 : f32
    %115 = vector.broadcast %cst_56 : f32 to vector<8x128xf32>
    %116 = arith.subf %115, %114 : vector<8x128xf32>
    %117 = arith.mulf %89, %116 : vector<8x128xf32>
    %cst_57 = arith.constant 5.000000e-01 : f32
    %118 = vector.broadcast %cst_57 : f32 to vector<8x128xf32>
    %119 = arith.mulf %118, %82 : vector<8x128xf32>
    %cst_58 = arith.constant 1.000000e+00 : f32
    %120 = vector.broadcast %cst_58 : f32 to vector<8x128xf32>
    %121 = arith.addf %120, %117 : vector<8x128xf32>
    %122 = arith.mulf %119, %121 : vector<8x128xf32>
    %123 = arith.addf %122, %63 : vector<8x128xf32>
    %c5_i32_59 = arith.constant 5 : i32
    %124 = tpu.dynamic_rotate %123 by %c5_i32_59 dim 1 : vector<8x128xf32>, i32 -> vector<8x128xf32>
    %c4_i32_60 = arith.constant 4 : i32
    %125 = tpu.dynamic_rotate %123 by %c4_i32_60 dim 1 : vector<8x128xf32>, i32 -> vector<8x128xf32>
    %c3_i32_61 = arith.constant 3 : i32
    %126 = tpu.dynamic_rotate %123 by %c3_i32_61 dim 1 : vector<8x128xf32>, i32 -> vector<8x128xf32>
    %c1_i32_62 = arith.constant 1 : i32
    %127 = tpu.dynamic_rotate %123 by %c1_i32_62 dim 1 : vector<8x128xf32>, i32 -> vector<8x128xf32>
    %c127_i32_63 = arith.constant 127 : i32
    %128 = tpu.dynamic_rotate %123 by %c127_i32_63 dim 1 : vector<8x128xf32>, i32 -> vector<8x128xf32>
    %c125_i32_64 = arith.constant 125 : i32
    %129 = tpu.dynamic_rotate %123 by %c125_i32_64 dim 1 : vector<8x128xf32>, i32 -> vector<8x128xf32>
    %c124_i32_65 = arith.constant 124 : i32
    %130 = tpu.dynamic_rotate %123 by %c124_i32_65 dim 1 : vector<8x128xf32>, i32 -> vector<8x128xf32>
    %c123_i32_66 = arith.constant 123 : i32
    %131 = tpu.dynamic_rotate %123 by %c123_i32_66 dim 1 : vector<8x128xf32>, i32 -> vector<8x128xf32>
    %132 = tpu.concatenate %124, %125, %126, %127, %123, %128, %129, %130, %131 in 0 : vector<8x128xf32>, vector<8x128xf32>, vector<8x128xf32>, vector<8x128xf32>, vector<8x128xf32>, vector<8x128xf32>, vector<8x128xf32>, vector<8x128xf32>, vector<8x128xf32> -> vector<72x128xf32>
    %133 = arith.mulf %132, %3 : vector<72x128xf32>
    %c2 = arith.constant 2 : index
    %c0_67 = arith.constant 0 : index
    %c0_68 = arith.constant 0 : index
    %134 = vector.load %arg1[%c2, %c0_67, %c0_68] : memref<4x8x72xf32, #tpu.memory_space<vmem>>, vector<1x8x72xf32>
    %135 = vector.shape_cast %134 : vector<1x8x72xf32> to vector<8x72xf32>
    %cst_69 = arith.constant dense<0.000000e+00> : vector<8x128xf32>
    %136 = tpu.matmul %135, %133, %cst_69 {dimension_numbers = #tpu.dot_dimension_numbers<[1], [0], [0], [1], [0, 0, 1, 1], [], []>} : vector<8x72xf32>, vector<72x128xf32>, vector<8x128xf32> -> vector<8x128xf32>
    %c2_70 = arith.constant 2 : index
    %c0_71 = arith.constant 0 : index
    %c0_72 = arith.constant 0 : index
    %137 = vector.load %arg2[%c2_70, %c0_71, %c0_72] : memref<4x8x128xf32, #tpu.memory_space<vmem>>, vector<1x8x128xf32>
    %138 = vector.shape_cast %137 : vector<1x8x128xf32> to vector<8x128xf32>
    %139 = arith.mulf %136, %138 : vector<8x128xf32>
    %c2_73 = arith.constant 2 : index
    %c0_74 = arith.constant 0 : index
    %c0_75 = arith.constant 0 : index
    %140 = vector.load %arg3[%c2_73, %c0_74, %c0_75] : memref<4x8x128xf32, #tpu.memory_space<vmem>>, vector<1x8x128xf32>
    %141 = vector.shape_cast %140 : vector<1x8x128xf32> to vector<8x128xf32>
    %142 = arith.addf %139, %141 : vector<8x128xf32>
    %cst_76 = arith.constant 0.707106769 : f32
    %143 = vector.broadcast %cst_76 : f32 to vector<8x128xf32>
    %144 = arith.mulf %142, %143 : vector<8x128xf32>
    %cst_77 = arith.constant 0.000000e+00 : f32
    %145 = vector.broadcast %cst_77 : f32 to vector<8x128xf32>
    %146 = arith.cmpf oge, %144, %145 : vector<8x128xf32>
    %cst_78 = arith.constant 1.000000e+00 : f32
    %cst_79 = arith.constant -1.000000e+00 : f32
    %147 = vector.broadcast %cst_78 : f32 to vector<8x128xf32>
    %148 = vector.broadcast %cst_79 : f32 to vector<8x128xf32>
    %149 = arith.select %146, %147, %148 : vector<8x128xi1>, vector<8x128xf32>
    %150 = math.absf %144 : vector<8x128xf32>
    %cst_80 = arith.constant 0.327591091 : f32
    %151 = vector.broadcast %cst_80 : f32 to vector<8x128xf32>
    %152 = arith.mulf %151, %150 : vector<8x128xf32>
    %cst_81 = arith.constant 1.000000e+00 : f32
    %153 = vector.broadcast %cst_81 : f32 to vector<8x128xf32>
    %154 = arith.addf %153, %152 : vector<8x128xf32>
    %155 = tpu.reciprocal %154 {approx = true} : vector<8x128xf32> -> vector<8x128xf32>
    %cst_82 = arith.constant 1.06140542 : f32
    %156 = vector.broadcast %cst_82 : f32 to vector<8x128xf32>
    %157 = arith.mulf %156, %155 : vector<8x128xf32>
    %cst_83 = arith.constant -1.45315206 : f32
    %158 = vector.broadcast %cst_83 : f32 to vector<8x128xf32>
    %159 = arith.addf %157, %158 : vector<8x128xf32>
    %160 = arith.mulf %159, %155 : vector<8x128xf32>
    %cst_84 = arith.constant 1.42141378 : f32
    %161 = vector.broadcast %cst_84 : f32 to vector<8x128xf32>
    %162 = arith.addf %160, %161 : vector<8x128xf32>
    %163 = arith.mulf %162, %155 : vector<8x128xf32>
    %cst_85 = arith.constant -0.284496725 : f32
    %164 = vector.broadcast %cst_85 : f32 to vector<8x128xf32>
    %165 = arith.addf %163, %164 : vector<8x128xf32>
    %166 = arith.mulf %165, %155 : vector<8x128xf32>
    %cst_86 = arith.constant 0.254829586 : f32
    %167 = vector.broadcast %cst_86 : f32 to vector<8x128xf32>
    %168 = arith.addf %166, %167 : vector<8x128xf32>
    %169 = arith.mulf %168, %155 : vector<8x128xf32>
    %cst_87 = arith.constant 0.000000e+00 : f32
    %170 = vector.broadcast %cst_87 : f32 to vector<8x128xf32>
    %171 = arith.subf %170, %150 : vector<8x128xf32>
    %172 = arith.mulf %171, %150 : vector<8x128xf32>
    %173 = math.exp %172 : vector<8x128xf32>
    %174 = arith.mulf %169, %173 : vector<8x128xf32>
    %cst_88 = arith.constant 1.000000e+00 : f32
    %175 = vector.broadcast %cst_88 : f32 to vector<8x128xf32>
    %176 = arith.subf %175, %174 : vector<8x128xf32>
    %177 = arith.mulf %149, %176 : vector<8x128xf32>
    %cst_89 = arith.constant 5.000000e-01 : f32
    %178 = vector.broadcast %cst_89 : f32 to vector<8x128xf32>
    %179 = arith.mulf %178, %142 : vector<8x128xf32>
    %cst_90 = arith.constant 1.000000e+00 : f32
    %180 = vector.broadcast %cst_90 : f32 to vector<8x128xf32>
    %181 = arith.addf %180, %177 : vector<8x128xf32>
    %182 = arith.mulf %179, %181 : vector<8x128xf32>
    %183 = arith.addf %182, %123 : vector<8x128xf32>
    %c5_i32_91 = arith.constant 5 : i32
    %184 = tpu.dynamic_rotate %183 by %c5_i32_91 dim 1 : vector<8x128xf32>, i32 -> vector<8x128xf32>
    %c4_i32_92 = arith.constant 4 : i32
    %185 = tpu.dynamic_rotate %183 by %c4_i32_92 dim 1 : vector<8x128xf32>, i32 -> vector<8x128xf32>
    %c3_i32_93 = arith.constant 3 : i32
    %186 = tpu.dynamic_rotate %183 by %c3_i32_93 dim 1 : vector<8x128xf32>, i32 -> vector<8x128xf32>
    %c1_i32_94 = arith.constant 1 : i32
    %187 = tpu.dynamic_rotate %183 by %c1_i32_94 dim 1 : vector<8x128xf32>, i32 -> vector<8x128xf32>
    %c127_i32_95 = arith.constant 127 : i32
    %188 = tpu.dynamic_rotate %183 by %c127_i32_95 dim 1 : vector<8x128xf32>, i32 -> vector<8x128xf32>
    %c125_i32_96 = arith.constant 125 : i32
    %189 = tpu.dynamic_rotate %183 by %c125_i32_96 dim 1 : vector<8x128xf32>, i32 -> vector<8x128xf32>
    %c124_i32_97 = arith.constant 124 : i32
    %190 = tpu.dynamic_rotate %183 by %c124_i32_97 dim 1 : vector<8x128xf32>, i32 -> vector<8x128xf32>
    %c123_i32_98 = arith.constant 123 : i32
    %191 = tpu.dynamic_rotate %183 by %c123_i32_98 dim 1 : vector<8x128xf32>, i32 -> vector<8x128xf32>
    %192 = tpu.concatenate %184, %185, %186, %187, %183, %188, %189, %190, %191 in 0 : vector<8x128xf32>, vector<8x128xf32>, vector<8x128xf32>, vector<8x128xf32>, vector<8x128xf32>, vector<8x128xf32>, vector<8x128xf32>, vector<8x128xf32>, vector<8x128xf32> -> vector<72x128xf32>
    %193 = arith.mulf %192, %3 : vector<72x128xf32>
    %c3 = arith.constant 3 : index
    %c0_99 = arith.constant 0 : index
    %c0_100 = arith.constant 0 : index
    %194 = vector.load %arg1[%c3, %c0_99, %c0_100] : memref<4x8x72xf32, #tpu.memory_space<vmem>>, vector<1x8x72xf32>
    %195 = vector.shape_cast %194 : vector<1x8x72xf32> to vector<8x72xf32>
    %cst_101 = arith.constant dense<0.000000e+00> : vector<8x128xf32>
    %196 = tpu.matmul %195, %193, %cst_101 {dimension_numbers = #tpu.dot_dimension_numbers<[1], [0], [0], [1], [0, 0, 1, 1], [], []>} : vector<8x72xf32>, vector<72x128xf32>, vector<8x128xf32> -> vector<8x128xf32>
    %c3_102 = arith.constant 3 : index
    %c0_103 = arith.constant 0 : index
    %c0_104 = arith.constant 0 : index
    %197 = vector.load %arg2[%c3_102, %c0_103, %c0_104] : memref<4x8x128xf32, #tpu.memory_space<vmem>>, vector<1x8x128xf32>
    %198 = vector.shape_cast %197 : vector<1x8x128xf32> to vector<8x128xf32>
    %199 = arith.mulf %196, %198 : vector<8x128xf32>
    %c3_105 = arith.constant 3 : index
    %c0_106 = arith.constant 0 : index
    %c0_107 = arith.constant 0 : index
    %200 = vector.load %arg3[%c3_105, %c0_106, %c0_107] : memref<4x8x128xf32, #tpu.memory_space<vmem>>, vector<1x8x128xf32>
    %201 = vector.shape_cast %200 : vector<1x8x128xf32> to vector<8x128xf32>
    %202 = arith.addf %199, %201 : vector<8x128xf32>
    %cst_108 = arith.constant 0.707106769 : f32
    %203 = vector.broadcast %cst_108 : f32 to vector<8x128xf32>
    %204 = arith.mulf %202, %203 : vector<8x128xf32>
    %cst_109 = arith.constant 0.000000e+00 : f32
    %205 = vector.broadcast %cst_109 : f32 to vector<8x128xf32>
    %206 = arith.cmpf oge, %204, %205 : vector<8x128xf32>
    %cst_110 = arith.constant 1.000000e+00 : f32
    %cst_111 = arith.constant -1.000000e+00 : f32
    %207 = vector.broadcast %cst_110 : f32 to vector<8x128xf32>
    %208 = vector.broadcast %cst_111 : f32 to vector<8x128xf32>
    %209 = arith.select %206, %207, %208 : vector<8x128xi1>, vector<8x128xf32>
    %210 = math.absf %204 : vector<8x128xf32>
    %cst_112 = arith.constant 0.327591091 : f32
    %211 = vector.broadcast %cst_112 : f32 to vector<8x128xf32>
    %212 = arith.mulf %211, %210 : vector<8x128xf32>
    %cst_113 = arith.constant 1.000000e+00 : f32
    %213 = vector.broadcast %cst_113 : f32 to vector<8x128xf32>
    %214 = arith.addf %213, %212 : vector<8x128xf32>
    %215 = tpu.reciprocal %214 {approx = true} : vector<8x128xf32> -> vector<8x128xf32>
    %cst_114 = arith.constant 1.06140542 : f32
    %216 = vector.broadcast %cst_114 : f32 to vector<8x128xf32>
    %217 = arith.mulf %216, %215 : vector<8x128xf32>
    %cst_115 = arith.constant -1.45315206 : f32
    %218 = vector.broadcast %cst_115 : f32 to vector<8x128xf32>
    %219 = arith.addf %217, %218 : vector<8x128xf32>
    %220 = arith.mulf %219, %215 : vector<8x128xf32>
    %cst_116 = arith.constant 1.42141378 : f32
    %221 = vector.broadcast %cst_116 : f32 to vector<8x128xf32>
    %222 = arith.addf %220, %221 : vector<8x128xf32>
    %223 = arith.mulf %222, %215 : vector<8x128xf32>
    %cst_117 = arith.constant -0.284496725 : f32
    %224 = vector.broadcast %cst_117 : f32 to vector<8x128xf32>
    %225 = arith.addf %223, %224 : vector<8x128xf32>
    %226 = arith.mulf %225, %215 : vector<8x128xf32>
    %cst_118 = arith.constant 0.254829586 : f32
    %227 = vector.broadcast %cst_118 : f32 to vector<8x128xf32>
    %228 = arith.addf %226, %227 : vector<8x128xf32>
    %229 = arith.mulf %228, %215 : vector<8x128xf32>
    %cst_119 = arith.constant 0.000000e+00 : f32
    %230 = vector.broadcast %cst_119 : f32 to vector<8x128xf32>
    %231 = arith.subf %230, %210 : vector<8x128xf32>
    %232 = arith.mulf %231, %210 : vector<8x128xf32>
    %233 = math.exp %232 : vector<8x128xf32>
    %234 = arith.mulf %229, %233 : vector<8x128xf32>
    %cst_120 = arith.constant 1.000000e+00 : f32
    %235 = vector.broadcast %cst_120 : f32 to vector<8x128xf32>
    %236 = arith.subf %235, %234 : vector<8x128xf32>
    %237 = arith.mulf %209, %236 : vector<8x128xf32>
    %cst_121 = arith.constant 5.000000e-01 : f32
    %238 = vector.broadcast %cst_121 : f32 to vector<8x128xf32>
    %239 = arith.mulf %238, %202 : vector<8x128xf32>
    %cst_122 = arith.constant 1.000000e+00 : f32
    %240 = vector.broadcast %cst_122 : f32 to vector<8x128xf32>
    %241 = arith.addf %240, %237 : vector<8x128xf32>
    %242 = arith.mulf %239, %241 : vector<8x128xf32>
    %243 = arith.addf %242, %183 : vector<8x128xf32>
    %c0_123 = arith.constant 0 : index
    %c0_124 = arith.constant 0 : index
    %244 = vector.load %arg5[%c0_123, %c0_124] : memref<8x128xf32, #tpu.memory_space<vmem>>, vector<8x128xf32>
    %245 = arith.mulf %243, %244 : vector<8x128xf32>
    %c0_125 = arith.constant 0 : index
    %c0_126 = arith.constant 0 : index
    %246 = vector.load %arg6[%c0_125, %c0_126] : memref<8x128xf32, #tpu.memory_space<vmem>>, vector<8x128xf32>
    tpu.vector_store %arg6[%c0_125, %c0_126], %245 {strides = array<i32>} : memref<8x128xf32, #tpu.memory_space<vmem>>, vector<8x128xf32>,
    return
  }
}

</mosaic_0001>

<llo_original>
// kernel: tpu_custom_call.1
$region0: #{tpu_custom_call.1}
  #allocation0 [shape = 'u32[]', space=smem, size = 0x4, offset = 0x4, fixed_abs, tag = 'smem constant byte address 0x4 - core index']
  #allocation1 [shape = 'u32[144,128]{1,0:T(1,128)}', space=vmem, size = 0x12000, scoped, tag = 'internal scratch']
  %s0 = inlined_call_operand.hbm [shape: f32[1,128], index: 0, kind: input, shape index: {}]
  %s1 = inlined_call_operand.hbm [shape: f32[4,8,72], index: 1, kind: input, shape index: {}]
  %s2 = inlined_call_operand.hbm [shape: f32[4,8,128], index: 2, kind: input, shape index: {}]
  %s3 = inlined_call_operand.hbm [shape: f32[4,8,128], index: 3, kind: input, shape index: {}]
  %s4 = inlined_call_operand.hbm [shape: f32[72,128], index: 4, kind: input, shape index: {}]
  %s5 = inlined_call_operand.vmem [shape: f32[8,128], index: 5, kind: input, shape index: {}]
  %s6 = inlined_call_operand.hbm [shape: f32[8,128], index: 6, kind: output, shape index: {}]
  %s7 = sld [smem:[#allocation0]]
  $region54: #{tpu_custom_call.1} parent=0
    _
  %s9 = ssub.s32 1, %s7
  %s10 = scalar_select 0, %s9, %s7
  $region1: #{tpu_custom_call.1} parent=0
    #allocation2 [shape = 'u8[512]{0}', space=vmem, size = 0x400, scoped, tag = 'input window, operand 0, single buffered']
    #allocation3 [shape = 's32[1]{0}', space=sflag, size = 0x4, scoped, tag = 'scoped memory for tpu_custom_call.1']
    #allocation4 [shape = 's32[1]{0}', space=sflag, size = 0x4, scoped, tag = 'scoped memory for tpu_custom_call.1']
    #allocation5 [shape = 'u8[16384]{0}', space=vmem, size = 0x4000, scoped, tag = 'input window, operand 1, single buffered']
    #allocation6 [shape = 's32[1]{0}', space=sflag, size = 0x4, scoped, tag = 'scoped memory for tpu_custom_call.1']
    #allocation7 [shape = 'u8[16384]{0}', space=vmem, size = 0x4000, scoped, tag = 'input window, operand 2, single buffered']
    #allocation8 [shape = 'u8[16384]{0}', space=vmem, size = 0x4000, scoped, tag = 'input window, operand 3, single buffered']
    #allocation9 [shape = 's32[1]{0}', space=sflag, size = 0x4, scoped, tag = 'scoped memory for tpu_custom_call.1']
    #allocation10 [shape = 'u8[36864]{0}', space=vmem, size = 0x9000, scoped, tag = 'input window, operand 4, single buffered']
    #allocation11 [shape = 'u8[4096]{0}', space=vmem, size = 0x1000, scoped, tag = 'output window, operand 0, single buffered']
    %11 = vsyncpa [#allocation3], 0
    %12 = vsyncpa [#allocation6], 0
    %13 = vsyncpa [#allocation9], 0
    %14 = vsyncpa [#allocation4], 0
    // Predicated region
    $region2: #{tpu_custom_call.1} parent=1 // pred_check
      _
    $region3: #{tpu_custom_call.1} parent=1 // pred_check_branch
      %16 = sbr.rel (0) target = $region5
    $region4: #{tpu_custom_call.1} parent=1 // pred_region
      %s18 = ssub.s32 16, 16
      %19 = vsyncadd [#allocation3], %s18
      %s21 = sshll.u32 [#allocation2], 4
      %s22 = int_to_ptr.vmem [resolvable:$true] %s21
      %24 = dma.hbm_to_vmem [thread:$0]  %s0, 16, %s22, [#allocation3]
    $region5: #{tpu_custom_call.1} parent=1 // pred_fallthru
      _
    // Predicated region
    $region6: #{tpu_custom_call.1} parent=1 // pred_check
      _
    $region7: #{tpu_custom_call.1} parent=1 // pred_check_branch
      %26 = sbr.rel (0) target = $region9
    $region8: #{tpu_custom_call.1} parent=1 // pred_region
      %s28 = ssub.s32 512, 512
      %29 = vsyncadd [#allocation6], %s28
      %s30 = sshll.u32 [#allocation5], 4
      %s31 = int_to_ptr.vmem [resolvable:$true] %s30
      %36 = dma.hbm_to_vmem [thread:$0]  %s1, 512, %s31, [#allocation6], 128, 128, 8
    $region9: #{tpu_custom_call.1} parent=1 // pred_fallthru
      _
    // Predicated region
    $region10: #{tpu_custom_call.1} parent=1 // pred_check
      _
    $region11: #{tpu_custom_call.1} parent=1 // pred_check_branch
      %38 = sbr.rel (0) target = $region13
    $region12: #{tpu_custom_call.1} parent=1 // pred_region
      %s40 = ssub.s32 512, 512
      %41 = vsyncadd [#allocation6], %s40
      %s42 = sshll.u32 [#allocation7], 4
      %s43 = int_to_ptr.vmem [resolvable:$true] %s42
      %48 = dma.hbm_to_vmem [thread:$0]  %s2, 512, %s43, [#allocation6], 128, 128, 8
    $region13: #{tpu_custom_call.1} parent=1 // pred_fallthru
      _
    // Predicated region
    $region14: #{tpu_custom_call.1} parent=1 // pred_check
      _
    $region15: #{tpu_custom_call.1} parent=1 // pred_check_branch
      %50 = sbr.rel (0) target = $region17
    $region16: #{tpu_custom_call.1} parent=1 // pred_region
      %s52 = ssub.s32 512, 512
      %53 = vsyncadd [#allocation9], %s52
      %s54 = sshll.u32 [#allocation8], 4
      %s55 = int_to_ptr.vmem [resolvable:$true] %s54
      %60 = dma.hbm_to_vmem [thread:$0]  %s3, 512, %s55, [#allocation9], 128, 128, 8
    $region17: #{tpu_custom_call.1} parent=1 // pred_fallthru
      _
    // Predicated region
    $region18: #{tpu_custom_call.1} parent=1 // pred_check
      _
    $region19: #{tpu_custom_call.1} parent=1 // pred_check_branch
      %62 = sbr.rel (0) target = $region21
    $region20: #{tpu_custom_call.1} parent=1 // pred_region
      %s64 = ssub.s32 1152, 1152
      %65 = vsyncadd [#allocation9], %s64
      %s66 = sshll.u32 [#allocation10], 4
      %s67 = int_to_ptr.vmem [resolvable:$true] %s66
      %72 = dma.hbm_to_vmem [thread:$0]  %s4, 1152, %s67, [#allocation9], 128, 128, 8
    $region21: #{tpu_custom_call.1} parent=1 // pred_fallthru
      _
    // Predicated region
    $region22: #{tpu_custom_call.1} parent=1 // pred_check
      _
    $region23: #{tpu_custom_call.1} parent=1 // pred_check_branch
      %74 = sbr.rel (0) target = $region25
    $region24: #{tpu_custom_call.1} parent=1 // pred_region
      _
    $region25: #{tpu_custom_call.1} parent=1 // pred_fallthru
      _
    // Predicated region
    $region26: #{tpu_custom_call.1} parent=1 // pred_check
      _
    $region27: #{tpu_custom_call.1} parent=1 // pred_check_branch
      %76 = sbr.rel (0) target = $region29
    $region28: #{tpu_custom_call.1} parent=1 // pred_region
      %77 = dma.done [#allocation3], 16
    $region29: #{tpu_custom_call.1} parent=1 // pred_fallthru
      _
    // Predicated region
    $region30: #{tpu_custom_call.1} parent=1 // pred_check
      _
    $region31: #{tpu_custom_call.1} parent=1 // pred_check_branch
      %79 = sbr.rel (0) target = $region33
    $region32: #{tpu_custom_call.1} parent=1 // pred_region
      %80 = dma.done [#allocation6], 512
    $region33: #{tpu_custom_call.1} parent=1 // pred_fallthru
      _
    // Predicated region
    $region34: #{tpu_custom_call.1} parent=1 // pred_check
      _
    $region35: #{tpu_custom_call.1} parent=1 // pred_check_branch
      %82 = sbr.rel (0) target = $region37
    $region36: #{tpu_custom_call.1} parent=1 // pred_region
      %83 = dma.done [#allocation6], 512
    $region37: #{tpu_custom_call.1} parent=1 // pred_fallthru
      _
    // Predicated region
    $region38: #{tpu_custom_call.1} parent=1 // pred_check
      _
    $region39: #{tpu_custom_call.1} parent=1 // pred_check_branch
      %85 = sbr.rel (0) target = $region41
    $region40: #{tpu_custom_call.1} parent=1 // pred_region
      %86 = dma.done [#allocation9], 512
    $region41: #{tpu_custom_call.1} parent=1 // pred_fallthru
      _
    // Predicated region
    $region42: #{tpu_custom_call.1} parent=1 // pred_check
      _
    $region43: #{tpu_custom_call.1} parent=1 // pred_check_branch
      %88 = sbr.rel (0) target = $region45
    $region44: #{tpu_custom_call.1} parent=1 // pred_region
      %89 = dma.done [#allocation9], 1152
    $region45: #{tpu_custom_call.1} parent=1 // pred_fallthru
      _
    %v90 = vld [vmem:[#allocation2] sm:$0x1]
    %v92 = vlaneseq
    %v93 = vshrl.u32 %v92, 7
    %v94 = vsub.s32 0, %v93
    %v95 = vrot.slane %v90, %v94
    %v97 = vld [vmem:[#allocation10] sm:$0xff]
    %v98 = vld [vmem:[#allocation10 + $0x8] sm:$0xff]
    %v99 = vld [vmem:[#allocation10 + $0x10] sm:$0xff]
    %v100 = vld [vmem:[#allocation10 + $0x18] sm:$0xff]
    %v101 = vld [vmem:[#allocation10 + $0x20] sm:$0xff]
    %v102 = vld [vmem:[#allocation10 + $0x28] sm:$0xff]
    %v103 = vld [vmem:[#allocation10 + $0x30] sm:$0xff]
    %v104 = vld [vmem:[#allocation10 + $0x38] sm:$0xff]
    %v105 = vld [vmem:[#allocation10 + $0x40] sm:$0xff]
    %106 = vrot.lane.b32.xlu0 %v95, 5
    %v107 = vpop.permute.xlu0 %106
    %108 = vrot.lane.b32.xlu0 %v95, 4
    %v109 = vpop.permute.xlu0 %108
    %110 = vrot.lane.b32.xlu0 %v95, 3
    %v111 = vpop.permute.xlu0 %110
    %112 = vrot.lane.b32.xlu0 %v95, 1
    %v113 = vpop.permute.xlu0 %112
    %114 = vrot.lane.b32.xlu0 %v95, 127
    %v115 = vpop.permute.xlu0 %114
    %116 = vrot.lane.b32.xlu0 %v95, 125
    %v117 = vpop.permute.xlu0 %116
    %118 = vrot.lane.b32.xlu0 %v95, 124
    %v119 = vpop.permute.xlu0 %118
    %120 = vrot.lane.b32.xlu0 %v95, 123
    %v121 = vpop.permute.xlu0 %120
    %v122 = vmul.f32 %v107, %v97
    %v123 = vmul.f32 %v109, %v98
    %v124 = vmul.f32 %v111, %v99
    %v125 = vmul.f32 %v113, %v100
    %v126 = vmul.f32 %v95, %v101
    %v127 = vmul.f32 %v115, %v102
    %v128 = vmul.f32 %v117, %v103
    %v129 = vmul.f32 %v119, %v104
    %v130 = vmul.f32 %v121, %v105
    %v131 = vld [vmem:[#allocation5] sm:$0xff]
    %vm132 = vcmask 588800
    %v134 = vsel %vm132, %v131, 0
    %136 = vmatprep.subr.mxu0 0.0
    %137 = vmatpush1.msra.mxu0 %v122
    %138 = vmatprep.subr.mxu0 0.0
    %139 = vmatpush1.msra.mxu0 %v123
    %140 = vmatprep.subr.mxu0 0.0
    %141 = vmatpush1.msra.mxu0 %v124
    %142 = vmatprep.subr.mxu0 0.0
    %143 = vmatpush1.msra.mxu0 %v125
    %144 = vmatprep.subr.mxu0 0.0
    %145 = vmatpush1.msra.mxu0 %v126
    %146 = vmatprep.subr.mxu0 0.0
    %147 = vmatpush1.msra.mxu0 %v127
    %148 = vmatprep.subr.mxu0 0.0
    %149 = vmatpush1.msra.mxu0 %v128
    %150 = vmatprep.subr.mxu0 0.0
    %151 = vmatpush1.msra.mxu0 %v129
    %152 = vmatprep.subr.mxu0 0.0
    %153 = vmatpush1.msra.mxu0 %v130
    %154 = vmatprep.subr.mxu0 0.0
    %155 = vmatpush1.msra.mxu0 0.0
    %156 = vmatprep.subr.mxu0 0.0
    %157 = vmatpush1.msra.mxu0 0.0
    %158 = vmatprep.subr.mxu0 0.0
    %159 = vmatpush1.msra.mxu0 0.0
    %160 = vmatprep.subr.mxu0 0.0
    %161 = vmatpush1.msra.mxu0 0.0
    %162 = vmatprep.subr.mxu0 0.0
    %163 = vmatpush1.msra.mxu0 0.0
    %164 = vmatprep.subr.mxu0 0.0
    %165 = vmatpush1.msra.mxu0 0.0
    %166 = vmatprep.subr.mxu0 0.0
    %167 = vmatpush1.msra.mxu0 0.0
    %168 = vmatprep.subr.mxu0 0.0
    %169 = vmatpush1.msra.mxu0 0.0
    %170 = vmatprep.subr.mxu0 0.0
    %171 = vmatpush1.msra.mxu0 0.0
    %172 = vmatprep.subr.mxu0 0.0
    %173 = vmatpush1.msra.mxu0 0.0
    %174 = vmatprep.subr.mxu0 0.0
    %175 = vmatpush1.msra.mxu0 0.0
    %176 = vmatprep.subr.mxu0 0.0
    %177 = vmatpush1.msra.mxu0 0.0
    %178 = vmatprep.subr.mxu0 0.0
    %179 = vmatpush1.msra.mxu0 0.0
    %180 = vmatprep.subr.mxu0 0.0
    %181 = vmatpush1.msra.mxu0 0.0
    %182 = vmatprep.subr.mxu0 0.0
    %183 = vmatpush1.msra.mxu0 0.0
    %184 = vmatprep.subr.mxu0 0.0
    %185 = vmatpush1.msra.mxu0 0.0
    %186 = vmatprep.subr.mxu0 0.0
    %187 = vmatpush1.msra.mxu0 0.0
    %188 = vmatprep.subr.mxu0 0.0
    %189 = vmatpush1.msra.mxu0 0.0
    %190 = vmatprep.subr.mxu0 0.0
    %191 = vmatpush1.msra.mxu0 0.0
    %192 = vmatprep.subr.mxu0 0.0
    %193 = vmatpush1.msra.mxu0 0.0
    %194 = vmatprep.subr.mxu0 0.0
    %195 = vmatpush1.msra.mxu0 0.0
    %196 = vmatprep.subr.mxu0 0.0
    %197 = vmatpush1.msra.mxu0 0.0
    %198 = vmatprep.subr.mxu0 0.0
    %199 = vmatpush1.msra.mxu0 0.0
    %200 = vmatprep.mubr.f32.mxu0 0.0
    %201 = vmatmul.mubr.f32.gmra.mrb[0].mxu0 %v134
    %v202 = vpop.f32.mrb[0].mxu0
    %v203 = vadd.f32 0.0, %v202
    %v204 = vpop.f32.mrb[0].mxu0
    %205 = vdwg.mxu0
    %v206 = vld [vmem:[#allocation7] sm:$0xff]
    %v207 = vmul.f32 %v203, %v206
    %v208 = vld [vmem:[#allocation8] sm:$0xff]
    %v209 = vadd.f32 %v207, %v208
    %v210 = vmul.f32 %v209, 0.70710677
    %vm211 = vcmp.ge.f32.partialorder %v210, 0.0
    %v212 = vsel %vm211, 1.0, -1.0
    %v213 = vand.u32 2147483647, %v210
    %v214 = vmul.f32 %v213, 0.3275911
    %v215 = vadd.f32 %v214, 1.0
    %v216 = vrcp.pop %v215
    %v217 = vmul.f32 %v216, 1.0614054
    %v218 = vadd.f32 %v217, -1.4531521
    %v219 = vmul.f32 %v218, %v216
    %v220 = vadd.f32 %v219, 1.4214138
    %v221 = vmul.f32 %v220, %v216
    %v222 = vadd.f32 %v221, -0.28449672
    %v223 = vmul.f32 %v222, %v216
    %v224 = vadd.f32 %v223, 0.2548296
    %v225 = vmul.f32 %v224, %v216
    %v226 = vsub.f32 0.0, %v213
    %v227 = vmul.f32 %v226, %v213
    %v228 = vmul.f32 %v227, 1.442695
    %v229 = vpow.pop %v228
    %v230 = vmul.f32 %v225, %v229
    %v231 = vsub.f32 1.0, %v230
    %v232 = vmul.f32 %v212, %v231
    %v233 = vmul.f32 %v209, 0.5
    %v234 = vadd.f32 %v232, 1.0
    %v235 = vmul.f32 %v233, %v234
    %v236 = vadd.f32 %v235, %v95
    %237 = vrot.lane.b32.xlu0 %v236, 5
    %v238 = vpop.permute.xlu0 %237
    %239 = vrot.lane.b32.xlu0 %v236, 4
    %v240 = vpop.permute.xlu0 %239
    %241 = vrot.lane.b32.xlu0 %v236, 3
    %v242 = vpop.permute.xlu0 %241
    %243 = vrot.lane.b32.xlu0 %v236, 1
    %v244 = vpop.permute.xlu0 %243
    %245 = vrot.lane.b32.xlu0 %v236, 127
    %v246 = vpop.permute.xlu0 %245
    %247 = vrot.lane.b32.xlu0 %v236, 125
    %v248 = vpop.permute.xlu0 %247
    %249 = vrot.lane.b32.xlu0 %v236, 124
    %v250 = vpop.permute.xlu0 %249
    %251 = vrot.lane.b32.xlu0 %v236, 123
    %v252 = vpop.permute.xlu0 %251
    %v253 = vmul.f32 %v238, %v97
    %v254 = vmul.f32 %v240, %v98
    %v255 = vmul.f32 %v242, %v99
    %v256 = vmul.f32 %v244, %v100
    %v257 = vmul.f32 %v236, %v101
    %v258 = vmul.f32 %v246, %v102
    %v259 = vmul.f32 %v248, %v103
    %v260 = vmul.f32 %v250, %v104
    %v261 = vmul.f32 %v252, %v105
    %s262 = scalar_lea.vmem [#allocation5], 8
    %v263 = vld [vmem:[%s262] sm:$0xff]
    %v265 = vsel %vm132, %v263, 0
    %267 = vmatprep.subr.mxu0 0.0
    %268 = vmatpush1.msra.mxu0 %v253
    %269 = vmatprep.subr.mxu0 0.0
    %270 = vmatpush1.msra.mxu0 %v254
    %271 = vmatprep.subr.mxu0 0.0
    %272 = vmatpush1.msra.mxu0 %v255
    %273 = vmatprep.subr.mxu0 0.0
    %274 = vmatpush1.msra.mxu0 %v256
    %275 = vmatprep.subr.mxu0 0.0
    %276 = vmatpush1.msra.mxu0 %v257
    %277 = vmatprep.subr.mxu0 0.0
    %278 = vmatpush1.msra.mxu0 %v258
    %279 = vmatprep.subr.mxu0 0.0
    %280 = vmatpush1.msra.mxu0 %v259
    %281 = vmatprep.subr.mxu0 0.0
    %282 = vmatpush1.msra.mxu0 %v260
    %283 = vmatprep.subr.mxu0 0.0
    %284 = vmatpush1.msra.mxu0 %v261
    %285 = vmatprep.subr.mxu0 0.0
    %286 = vmatpush1.msra.mxu0 0.0
    %287 = vmatprep.subr.mxu0 0.0
    %288 = vmatpush1.msra.mxu0 0.0
    %289 = vmatprep.subr.mxu0 0.0
    %290 = vmatpush1.msra.mxu0 0.0
    %291 = vmatprep.subr.mxu0 0.0
    %292 = vmatpush1.msra.mxu0 0.0
    %293 = vmatprep.subr.mxu0 0.0
    %294 = vmatpush1.msra.mxu0 0.0
    %295 = vmatprep.subr.mxu0 0.0
    %296 = vmatpush1.msra.mxu0 0.0
    %297 = vmatprep.subr.mxu0 0.0
    %298 = vmatpush1.msra.mxu0 0.0
    %299 = vmatprep.subr.mxu0 0.0
    %300 = vmatpush1.msra.mxu0 0.0
    %301 = vmatprep.subr.mxu0 0.0
    %302 = vmatpush1.msra.mxu0 0.0
    %303 = vmatprep.subr.mxu0 0.0
    %304 = vmatpush1.msra.mxu0 0.0
    %305 = vmatprep.subr.mxu0 0.0
    %306 = vmatpush1.msra.mxu0 0.0
    %307 = vmatprep.subr.mxu0 0.0
    %308 = vmatpush1.msra.mxu0 0.0
    %309 = vmatprep.subr.mxu0 0.0
    %310 = vmatpush1.msra.mxu0 0.0
    %311 = vmatprep.subr.mxu0 0.0
    %312 = vmatpush1.msra.mxu0 0.0
    %313 = vmatprep.subr.mxu0 0.0
    %314 = vmatpush1.msra.mxu0 0.0
    %315 = vmatprep.subr.mxu0 0.0
    %316 = vmatpush1.msra.mxu0 0.0
    %317 = vmatprep.subr.mxu0 0.0
    %318 = vmatpush1.msra.mxu0 0.0
    %319 = vmatprep.subr.mxu0 0.0
    %320 = vmatpush1.msra.mxu0 0.0
    %321 = vmatprep.subr.mxu0 0.0
    %322 = vmatpush1.msra.mxu0 0.0
    %323 = vmatprep.subr.mxu0 0.0
    %324 = vmatpush1.msra.mxu0 0.0
    %325 = vmatprep.subr.mxu0 0.0
    %326 = vmatpush1.msra.mxu0 0.0
    %327 = vmatprep.subr.mxu0 0.0
    %328 = vmatpush1.msra.mxu0 0.0
    %329 = vmatprep.subr.mxu0 0.0
    %330 = vmatpush1.msra.mxu0 0.0
    %331 = vmatprep.mubr.f32.mxu0 0.0
    %332 = vmatmul.mubr.f32.gmra.mrb[0].mxu0 %v265
    %v333 = vpop.f32.mrb[0].mxu0
    %v334 = vadd.f32 0.0, %v333
    %v335 = vpop.f32.mrb[0].mxu0
    %336 = vdwg.mxu0
    %s337 = scalar_lea.vmem [#allocation7], 8
    %v338 = vld [vmem:[%s337] sm:$0xff]
    %v339 = vmul.f32 %v334, %v338
    %s340 = scalar_lea.vmem [#allocation8], 8
    %v341 = vld [vmem:[%s340] sm:$0xff]
    %v342 = vadd.f32 %v339, %v341
    %v343 = vmul.f32 %v342, 0.70710677
    %vm344 = vcmp.ge.f32.partialorder %v343, 0.0
    %v345 = vsel %vm344, 1.0, -1.0
    %v346 = vand.u32 2147483647, %v343
    %v347 = vmul.f32 %v346, 0.3275911
    %v348 = vadd.f32 %v347, 1.0
    %v349 = vrcp.pop %v348
    %v350 = vmul.f32 %v349, 1.0614054
    %v351 = vadd.f32 %v350, -1.4531521
    %v352 = vmul.f32 %v351, %v349
    %v353 = vadd.f32 %v352, 1.4214138
    %v354 = vmul.f32 %v353, %v349
    %v355 = vadd.f32 %v354, -0.28449672
    %v356 = vmul.f32 %v355, %v349
    %v357 = vadd.f32 %v356, 0.2548296
    %v358 = vmul.f32 %v357, %v349
    %v359 = vsub.f32 0.0, %v346
    %v360 = vmul.f32 %v359, %v346
    %v361 = vmul.f32 %v360, 1.442695
    %v362 = vpow.pop %v361
    %v363 = vmul.f32 %v358, %v362
    %v364 = vsub.f32 1.0, %v363
    %v365 = vmul.f32 %v345, %v364
    %v366 = vmul.f32 %v342, 0.5
    %v367 = vadd.f32 %v365, 1.0
    %v368 = vmul.f32 %v366, %v367
    %v369 = vadd.f32 %v368, %v236
    %370 = vrot.lane.b32.xlu0 %v369, 5
    %v371 = vpop.permute.xlu0 %370
    %372 = vrot.lane.b32.xlu0 %v369, 4
    %v373 = vpop.permute.xlu0 %372
    %374 = vrot.lane.b32.xlu0 %v369, 3
    %v375 = vpop.permute.xlu0 %374
    %376 = vrot.lane.b32.xlu0 %v369, 1
    %v377 = vpop.permute.xlu0 %376
    %378 = vrot.lane.b32.xlu0 %v369, 127
    %v379 = vpop.permute.xlu0 %378
    %380 = vrot.lane.b32.xlu0 %v369, 125
    %v381 = vpop.permute.xlu0 %380
    %382 = vrot.lane.b32.xlu0 %v369, 124
    %v383 = vpop.permute.xlu0 %382
    %384 = vrot.lane.b32.xlu0 %v369, 123
    %v385 = vpop.permute.xlu0 %384
    %v386 = vmul.f32 %v371, %v97
    %v387 = vmul.f32 %v373, %v98
    %v388 = vmul.f32 %v375, %v99
    %v389 = vmul.f32 %v377, %v100
    %v390 = vmul.f32 %v369, %v101
    %v391 = vmul.f32 %v379, %v102
    %v392 = vmul.f32 %v381, %v103
    %v393 = vmul.f32 %v383, %v104
    %v394 = vmul.f32 %v385, %v105
    %s395 = scalar_lea.vmem [#allocation5], 16
    %v396 = vld [vmem:[%s395] sm:$0xff]
    %v398 = vsel %vm132, %v396, 0
    %400 = vmatprep.subr.mxu0 0.0
    %401 = vmatpush1.msra.mxu0 %v386
    %402 = vmatprep.subr.mxu0 0.0
    %403 = vmatpush1.msra.mxu0 %v387
    %404 = vmatprep.subr.mxu0 0.0
    %405 = vmatpush1.msra.mxu0 %v388
    %406 = vmatprep.subr.mxu0 0.0
    %407 = vmatpush1.msra.mxu0 %v389
    %408 = vmatprep.subr.mxu0 0.0
    %409 = vmatpush1.msra.mxu0 %v390
    %410 = vmatprep.subr.mxu0 0.0
    %411 = vmatpush1.msra.mxu0 %v391
    %412 = vmatprep.subr.mxu0 0.0
    %413 = vmatpush1.msra.mxu0 %v392
    %414 = vmatprep.subr.mxu0 0.0
    %415 = vmatpush1.msra.mxu0 %v393
    %416 = vmatprep.subr.mxu0 0.0
    %417 = vmatpush1.msra.mxu0 %v394
    %418 = vmatprep.subr.mxu0 0.0
    %419 = vmatpush1.msra.mxu0 0.0
    %420 = vmatprep.subr.mxu0 0.0
    %421 = vmatpush1.msra.mxu0 0.0
    %422 = vmatprep.subr.mxu0 0.0
    %423 = vmatpush1.msra.mxu0 0.0
    %424 = vmatprep.subr.mxu0 0.0
    %425 = vmatpush1.msra.mxu0 0.0
    %426 = vmatprep.subr.mxu0 0.0
    %427 = vmatpush1.msra.mxu0 0.0
    %428 = vmatprep.subr.mxu0 0.0
    %429 = vmatpush1.msra.mxu0 0.0
    %430 = vmatprep.subr.mxu0 0.0
    %431 = vmatpush1.msra.mxu0 0.0
    %432 = vmatprep.subr.mxu0 0.0
    %433 = vmatpush1.msra.mxu0 0.0
    %434 = vmatprep.subr.mxu0 0.0
    %435 = vmatpush1.msra.mxu0 0.0
    %436 = vmatprep.subr.mxu0 0.0
    %437 = vmatpush1.msra.mxu0 0.0
    %438 = vmatprep.subr.mxu0 0.0
    %439 = vmatpush1.msra.mxu0 0.0
    %440 = vmatprep.subr.mxu0 0.0
    %441 = vmatpush1.msra.mxu0 0.0
    %442 = vmatprep.subr.mxu0 0.0
    %443 = vmatpush1.msra.mxu0 0.0
    %444 = vmatprep.subr.mxu0 0.0
    %445 = vmatpush1.msra.mxu0 0.0
    %446 = vmatprep.subr.mxu0 0.0
    %447 = vmatpush1.msra.mxu0 0.0
    %448 = vmatprep.subr.mxu0 0.0
    %449 = vmatpush1.msra.mxu0 0.0
    %450 = vmatprep.subr.mxu0 0.0
    %451 = vmatpush1.msra.mxu0 0.0
    %452 = vmatprep.subr.mxu0 0.0
    %453 = vmatpush1.msra.mxu0 0.0
    %454 = vmatprep.subr.mxu0 0.0
    %455 = vmatpush1.msra.mxu0 0.0
    %456 = vmatprep.subr.mxu0 0.0
    %457 = vmatpush1.msra.mxu0 0.0
    %458 = vmatprep.subr.mxu0 0.0
    %459 = vmatpush1.msra.mxu0 0.0
    %460 = vmatprep.subr.mxu0 0.0
    %461 = vmatpush1.msra.mxu0 0.0
    %462 = vmatprep.subr.mxu0 0.0
    %463 = vmatpush1.msra.mxu0 0.0
    %464 = vmatprep.mubr.f32.mxu0 0.0
    %465 = vmatmul.mubr.f32.gmra.mrb[0].mxu0 %v398
    %v466 = vpop.f32.mrb[0].mxu0
    %v467 = vadd.f32 0.0, %v466
    %v468 = vpop.f32.mrb[0].mxu0
    %469 = vdwg.mxu0
    %s470 = scalar_lea.vmem [#allocation7], 16
    %v471 = vld [vmem:[%s470] sm:$0xff]
    %v472 = vmul.f32 %v467, %v471
    %s473 = scalar_lea.vmem [#allocation8], 16
    %v474 = vld [vmem:[%s473] sm:$0xff]
    %v475 = vadd.f32 %v472, %v474
    %v476 = vmul.f32 %v475, 0.70710677
    %vm477 = vcmp.ge.f32.partialorder %v476, 0.0
    %v478 = vsel %vm477, 1.0, -1.0
    %v479 = vand.u32 2147483647, %v476
    %v480 = vmul.f32 %v479, 0.3275911
    %v481 = vadd.f32 %v480, 1.0
    %v482 = vrcp.pop %v481
    %v483 = vmul.f32 %v482, 1.0614054
    %v484 = vadd.f32 %v483, -1.4531521
    %v485 = vmul.f32 %v484, %v482
    %v486 = vadd.f32 %v485, 1.4214138
    %v487 = vmul.f32 %v486, %v482
    %v488 = vadd.f32 %v487, -0.28449672
    %v489 = vmul.f32 %v488, %v482
    %v490 = vadd.f32 %v489, 0.2548296
    %v491 = vmul.f32 %v490, %v482
    %v492 = vsub.f32 0.0, %v479
    %v493 = vmul.f32 %v492, %v479
    %v494 = vmul.f32 %v493, 1.442695
    %v495 = vpow.pop %v494
    %v496 = vmul.f32 %v491, %v495
    %v497 = vsub.f32 1.0, %v496
    %v498 = vmul.f32 %v478, %v497
    %v499 = vmul.f32 %v475, 0.5
    %v500 = vadd.f32 %v498, 1.0
    %v501 = vmul.f32 %v499, %v500
    %v502 = vadd.f32 %v501, %v369
    %503 = vrot.lane.b32.xlu0 %v502, 5
    %v504 = vpop.permute.xlu0 %503
    %505 = vrot.lane.b32.xlu0 %v502, 4
    %v506 = vpop.permute.xlu0 %505
    %507 = vrot.lane.b32.xlu0 %v502, 3
    %v508 = vpop.permute.xlu0 %507
    %509 = vrot.lane.b32.xlu0 %v502, 1
    %v510 = vpop.permute.xlu0 %509
    %511 = vrot.lane.b32.xlu0 %v502, 127
    %v512 = vpop.permute.xlu0 %511
    %513 = vrot.lane.b32.xlu0 %v502, 125
    %v514 = vpop.permute.xlu0 %513
    %515 = vrot.lane.b32.xlu0 %v502, 124
    %v516 = vpop.permute.xlu0 %515
    %517 = vrot.lane.b32.xlu0 %v502, 123
    %v518 = vpop.permute.xlu0 %517
    %v519 = vmul.f32 %v504, %v97
    %v520 = vmul.f32 %v506, %v98
    %v521 = vmul.f32 %v508, %v99
    %v522 = vmul.f32 %v510, %v100
    %v523 = vmul.f32 %v502, %v101
    %v524 = vmul.f32 %v512, %v102
    %v525 = vmul.f32 %v514, %v103
    %v526 = vmul.f32 %v516, %v104
    %v527 = vmul.f32 %v518, %v105
    %s528 = scalar_lea.vmem [#allocation5], 24
    %v529 = vld [vmem:[%s528] sm:$0xff]
    %v531 = vsel %vm132, %v529, 0
    %533 = vmatprep.subr.mxu0 0.0
    %534 = vmatpush1.msra.mxu0 %v519
    %535 = vmatprep.subr.mxu0 0.0
    %536 = vmatpush1.msra.mxu0 %v520
    %537 = vmatprep.subr.mxu0 0.0
    %538 = vmatpush1.msra.mxu0 %v521
    %539 = vmatprep.subr.mxu0 0.0
    %540 = vmatpush1.msra.mxu0 %v522
    %541 = vmatprep.subr.mxu0 0.0
    %542 = vmatpush1.msra.mxu0 %v523
    %543 = vmatprep.subr.mxu0 0.0
    %544 = vmatpush1.msra.mxu0 %v524
    %545 = vmatprep.subr.mxu0 0.0
    %546 = vmatpush1.msra.mxu0 %v525
    %547 = vmatprep.subr.mxu0 0.0
    %548 = vmatpush1.msra.mxu0 %v526
    %549 = vmatprep.subr.mxu0 0.0
    %550 = vmatpush1.msra.mxu0 %v527
    %551 = vmatprep.subr.mxu0 0.0
    %552 = vmatpush1.msra.mxu0 0.0
    %553 = vmatprep.subr.mxu0 0.0
    %554 = vmatpush1.msra.mxu0 0.0
    %555 = vmatprep.subr.mxu0 0.0
    %556 = vmatpush1.msra.mxu0 0.0
    %557 = vmatprep.subr.mxu0 0.0
    %558 = vmatpush1.msra.mxu0 0.0
    %559 = vmatprep.subr.mxu0 0.0
    %560 = vmatpush1.msra.mxu0 0.0
    %561 = vmatprep.subr.mxu0 0.0
    %562 = vmatpush1.msra.mxu0 0.0
    %563 = vmatprep.subr.mxu0 0.0
    %564 = vmatpush1.msra.mxu0 0.0
    %565 = vmatprep.subr.mxu0 0.0
    %566 = vmatpush1.msra.mxu0 0.0
    %567 = vmatprep.subr.mxu0 0.0
    %568 = vmatpush1.msra.mxu0 0.0
    %569 = vmatprep.subr.mxu0 0.0
    %570 = vmatpush1.msra.mxu0 0.0
    %571 = vmatprep.subr.mxu0 0.0
    %572 = vmatpush1.msra.mxu0 0.0
    %573 = vmatprep.subr.mxu0 0.0
    %574 = vmatpush1.msra.mxu0 0.0
    %575 = vmatprep.subr.mxu0 0.0
    %576 = vmatpush1.msra.mxu0 0.0
    %577 = vmatprep.subr.mxu0 0.0
    %578 = vmatpush1.msra.mxu0 0.0
    %579 = vmatprep.subr.mxu0 0.0
    %580 = vmatpush1.msra.mxu0 0.0
    %581 = vmatprep.subr.mxu0 0.0
    %582 = vmatpush1.msra.mxu0 0.0
    %583 = vmatprep.subr.mxu0 0.0
    %584 = vmatpush1.msra.mxu0 0.0
    %585 = vmatprep.subr.mxu0 0.0
    %586 = vmatpush1.msra.mxu0 0.0
    %587 = vmatprep.subr.mxu0 0.0
    %588 = vmatpush1.msra.mxu0 0.0
    %589 = vmatprep.subr.mxu0 0.0
    %590 = vmatpush1.msra.mxu0 0.0
    %591 = vmatprep.subr.mxu0 0.0
    %592 = vmatpush1.msra.mxu0 0.0
    %593 = vmatprep.subr.mxu0 0.0
    %594 = vmatpush1.msra.mxu0 0.0
    %595 = vmatprep.subr.mxu0 0.0
    %596 = vmatpush1.msra.mxu0 0.0
    %597 = vmatprep.mubr.f32.mxu0 0.0
    %598 = vmatmul.mubr.f32.gmra.mrb[0].mxu0 %v531
    %v599 = vpop.f32.mrb[0].mxu0
    %v600 = vadd.f32 0.0, %v599
    %v601 = vpop.f32.mrb[0].mxu0
    %602 = vdwg.mxu0
    %s603 = scalar_lea.vmem [#allocation7], 24
    %v604 = vld [vmem:[%s603] sm:$0xff]
    %v605 = vmul.f32 %v600, %v604
    %s606 = scalar_lea.vmem [#allocation8], 24
    %v607 = vld [vmem:[%s606] sm:$0xff]
    %v608 = vadd.f32 %v605, %v607
    %v609 = vmul.f32 %v608, 0.70710677
    %vm610 = vcmp.ge.f32.partialorder %v609, 0.0
    %v611 = vsel %vm610, 1.0, -1.0
    %v612 = vand.u32 2147483647, %v609
    %v613 = vmul.f32 %v612, 0.3275911
    %v614 = vadd.f32 %v613, 1.0
    %v615 = vrcp.pop %v614
    %v616 = vmul.f32 %v615, 1.0614054
    %v617 = vadd.f32 %v616, -1.4531521
    %v618 = vmul.f32 %v617, %v615
    %v619 = vadd.f32 %v618, 1.4214138
    %v620 = vmul.f32 %v619, %v615
    %v621 = vadd.f32 %v620, -0.28449672
    %v622 = vmul.f32 %v621, %v615
    %v623 = vadd.f32 %v622, 0.2548296
    %v624 = vmul.f32 %v623, %v615
    %v625 = vsub.f32 0.0, %v612
    %v626 = vmul.f32 %v625, %v612
    %v627 = vmul.f32 %v626, 1.442695
    %v628 = vpow.pop %v627
    %v629 = vmul.f32 %v624, %v628
    %v630 = vsub.f32 1.0, %v629
    %v631 = vmul.f32 %v611, %v630
    %v632 = vmul.f32 %v608, 0.5
    %v633 = vadd.f32 %v631, 1.0
    %v634 = vmul.f32 %v632, %v633
    %v635 = vadd.f32 %v634, %v502
    %v636 = vld [vmem:[%s5] sm:$0xff]
    %v637 = vmul.f32 %v635, %v636
    %638 = vst [vmem:[#allocation11] sm:$0xff] %v637
    // Predicated region
    $region46: #{tpu_custom_call.1} parent=1 // pred_check
      _
    $region47: #{tpu_custom_call.1} parent=1 // pred_check_branch
      %640 = sbr.rel (0) target = $region49
    $region48: #{tpu_custom_call.1} parent=1 // pred_region
      %s642 = ssub.s32 128, 128
      %643 = vsyncadd [#allocation4], %s642
      %s645 = sshll.u32 [#allocation11], 4
      %s646 = int_to_ptr.vmem [resolvable:$true] %s645
      %648 = dma.vmem_to_hbm [thread:$0]  %s646, 128, %s6, [#allocation4]
    $region49: #{tpu_custom_call.1} parent=1 // pred_fallthru
      _
    // Predicated region
    $region50: #{tpu_custom_call.1} parent=1 // pred_check
      _
    $region51: #{tpu_custom_call.1} parent=1 // pred_check_branch
      %650 = sbr.rel (0) target = $region53
    $region52: #{tpu_custom_call.1} parent=1 // pred_region
      %651 = dma.done [#allocation4], 128
    $region53: #{tpu_custom_call.1} parent=1 // pred_fallthru
      _
    %652 = vsyncpa [#allocation3], 1
    %653 = vsyncpa [#allocation6], 1
    %654 = vsyncpa [#allocation9], 1
    %655 = vsyncpa [#allocation4], 1

</llo_original>
